<compile_context>
chip_gen: v7x
topology: tpu7x:2x2x1
jax: 0.10.0
libtpu: 0.0.40
codegen_flags: <defaults>
</compile_context>

<pallas_src>
import functools

import jax
import jax.numpy as jnp
from jax.experimental import pallas as pl
from jax.experimental.pallas import tpu as pltpu


def _ce_kernel(logits_ref, tgt_ref, out_ref, *, ignore_index):
    """Per-tile cross-entropy partial sum and valid-row count.

    logits_ref : (TN, C)      float   VMEM
    tgt_ref    : (TN, 1)      int32   VMEM
    out_ref    : (1, 8, 128)  float32 VMEM
        sublane 0 -> sum over valid rows of (logsumexp(x) - x[target])
        sublane 1 -> number of valid (non-ignored) rows in this tile
    """
    x = logits_ref[...].astype(jnp.float32)                               # (TN, C)

    # Numerically-stable log-sum-exp over the class (lane) axis.
    m = jnp.max(x, axis=-1, keepdims=True)                                # (TN, 1)
    lse = jnp.log(jnp.sum(jnp.exp(x - m), axis=-1, keepdims=True)) + m    # (TN, 1)

    # Gather logits[row, target[row]] via an iota-compare mask (no dynamic gather).
    tgt = tgt_ref[...]                                                    # (TN, 1) int32
    col = jax.lax.broadcasted_iota(jnp.int32, x.shape, 1)                 # (TN, C)
    tgt_logit = jnp.sum(jnp.where(col == tgt, x, 0.0),
                        axis=-1, keepdims=True)                           # (TN, 1)

    # Rows with target == ignore_index (incl. batch padding) contribute nothing.
    valid = tgt != ignore_index                                           # (TN, 1)
    per_row = jnp.where(valid, lse - tgt_logit, 0.0)                      # (TN, 1)

    partial_sum = jnp.sum(per_row)                                        # scalar
    partial_cnt = jnp.sum(valid.astype(jnp.float32))                      # scalar

    # Lane-dense (unmasked) store: sublane 0 = sum, sublane 1 = count, rest = 0.
    row = jax.lax.broadcasted_iota(jnp.int32, (8, 128), 0)
    blk = jnp.where(row == 0, partial_sum,
                    jnp.where(row == 1, partial_cnt, 0.0))
    out_ref[...] = blk[None]


def cross_entropy_loss(logits: jax.Array, targets: jax.Array, *,
                       ignore_index: int = -100,
                       tile_n: int | None = None,
                       target_block_bytes: int = 4 << 20) -> jax.Array:
    """Mean cross-entropy over the batch. logits (N, C), targets (N,) ints."""
    N, C = logits.shape
    itemsize = jnp.dtype(logits.dtype).itemsize
    row_align = 16 if itemsize <= 2 else 8  # sublane packing for bf16 vs f32

    def _round_up(v, m):
        return ((v + m - 1) // m) * m

    # Pick tile_n so one logits block is ~target_block_bytes (HBM-bound regime),
    # but bound it so the (tile_n, 1) target block's lane padding stays small.
    if tile_n is None:
        tile_n = target_block_bytes // max(1, C * itemsize)
        tile_n = min(int(tile_n), 4096)
    tile_n = max(row_align, _round_up(int(tile_n), row_align))
    tile_n = min(tile_n, _round_up(N, row_align))  # don't over-pad tiny batches

    num_tiles = (N + tile_n - 1) // tile_n
    n_pad = num_tiles * tile_n

    tgt_i32 = targets.astype(jnp.int32)
    if n_pad != N:
        logits_p = jnp.pad(logits, ((0, n_pad - N), (0, 0)))
        tgt_p = jnp.pad(tgt_i32, (0, n_pad - N), constant_values=ignore_index)
    else:
        logits_p, tgt_p = logits, tgt_i32
    tgt2d = tgt_p.reshape(n_pad, 1)

    # Explicit VMEM budget: double-buffered logits + (lane-padded) targets + output,
    # clamped to [32 MiB, 64 MiB] so it pipelines on v5e/v6e and fits v7x's 64 MiB.
    block_bytes = tile_n * C * itemsize
    tgt_bytes = tile_n * 128 * 4            # (tile_n, 1) int32 pads lanes to 128
    need = 2 * (block_bytes + tgt_bytes + 8 * 128 * 4) + (4 << 20)
    vmem_limit = int(min(64 << 20, max(32 << 20, need)))

    kernel = functools.partial(_ce_kernel, ignore_index=ignore_index)

    partials = pl.pallas_call(
        kernel,
        out_shape=jax.ShapeDtypeStruct((num_tiles, 8, 128), jnp.float32),
        grid_spec=pltpu.PrefetchScalarGridSpec(
            num_scalar_prefetch=0,
            grid=(num_tiles,),
            in_specs=[
                pl.BlockSpec((tile_n, C), lambda i: (i, 0)),
                pl.BlockSpec((tile_n, 1), lambda i: (i, 0)),
            ],
            out_specs=pl.BlockSpec((1, 8, 128), lambda i: (i, 0, 0)),
        ),
        compiler_params=pltpu.CompilerParams(
            dimension_semantics=("parallel",),   # independent per-tile partials
            vmem_limit_bytes=vmem_limit,
        ),
    )(logits_p, tgt2d)

    total = jnp.sum(partials[:, 0, 0])
    count = jnp.sum(partials[:, 1, 0])
    return total / count


def _reference(logits, targets, ignore_index=-100):
    x = logits.astype(jnp.float32)
    lse = jax.scipy.special.logsumexp(x, axis=-1)
    t = targets.astype(jnp.int32)
    safe_t = jnp.clip(t, 0, x.shape[1] - 1)
    tgt_logit = jnp.take_along_axis(x, safe_t[:, None], axis=-1)[:, 0]
    valid = t != ignore_index
    per = jnp.where(valid, lse - tgt_logit, 0.0)
    return jnp.sum(per) / jnp.sum(valid.astype(jnp.float32))


if __name__ == "__main__":
    key = jax.random.PRNGKey(0)
    k1, k2, k3, k4, k5, k6 = jax.random.split(key, 6)

    # Test 1: small batch, all-valid targets (matches the PyTorch module's usage).
    N, C = 16, 32
    logits = jax.random.normal(k1, (N, C), dtype=jnp.float32)
    targets = jax.random.randint(k2, (N,), 0, C, dtype=jnp.int32)
    loss = jax.block_until_ready(cross_entropy_loss(logits, targets))
    ref = _reference(logits, targets)
    assert jnp.allclose(loss, ref, atol=1e-5, rtol=1e-5), (loss, ref)

    # Test 2: non-divisible batch, multiple tiles, and ignore_index rows.
    N2, C2 = 40, 32
    logits2 = jax.random.normal(k3, (N2, C2), dtype=jnp.float32)
    targets2 = jax.random.randint(k4, (N2,), 0, C2, dtype=jnp.int32)
    targets2 = targets2.at[3].set(-100).at[17].set(-100)
    loss2 = jax.block_until_ready(cross_entropy_loss(logits2, targets2, tile_n=16))
    ref2 = _reference(logits2, targets2)
    assert jnp.allclose(loss2, ref2, atol=1e-5, rtol=1e-5), (loss2, ref2)

    # Test 3: bf16 logits path (upcast happens inside the kernel).
    N3, C3 = 24, 64
    logits3 = jax.random.normal(k5, (N3, C3), dtype=jnp.bfloat16)
    targets3 = jax.random.randint(k6, (N3,), 0, C3, dtype=jnp.int32)
    loss3 = jax.block_until_ready(cross_entropy_loss(logits3, targets3))
    ref3 = _reference(logits3, targets3)
    assert jnp.allclose(loss3, ref3, atol=3e-2, rtol=3e-2), (loss3, ref3)

    print("KERNEL_OK")
</pallas_src>

<mosaic_0001>
module attributes {stable_mosaic.version = 11 : i64} {
  func.func @_ce_kernel(%arg0: i32, %arg1: memref<16x32xf32, #tpu.memory_space<vmem>>, %arg2: memref<16x1xi32, #tpu.memory_space<vmem>>, %arg3: memref<1x8x128xf32, #tpu.memory_space<vmem>>) attributes {dimension_semantics = [#tpu.dimension_semantics<parallel>], iteration_bounds = array<i64: 1>, scalar_prefetch = 0 : i64, scratch_operands = 0 : i64, tpu.core_type = #tpu.core_type<tc>, window_params = [{transform_indices = @transform_0, window_bounds = array<i64: 16, 32>}, {transform_indices = @transform_1, window_bounds = array<i64: 16, 1>}, {transform_indices = @transform_2, window_bounds = array<i64: 1, 8, 128>}]} {
    %c0 = arith.constant 0 : index
    %c0_0 = arith.constant 0 : index
    %0 = vector.load %arg1[%c0, %c0_0] : memref<16x32xf32, #tpu.memory_space<vmem>>, vector<16x32xf32>
    %cst = arith.constant dense<0xFF800000> : vector<16xf32>
    %1 = vector.multi_reduction <maximumf>, %0, %cst [1] : vector<16x32xf32> to vector<16xf32>
    %2 = vector.shape_cast %1 : vector<16xf32> to vector<16x1xf32>
    %3 = vector.broadcast %2 : vector<16x1xf32> to vector<16x32xf32>
    %4 = arith.subf %0, %3 : vector<16x32xf32>
    %5 = math.exp %4 : vector<16x32xf32>
    %cst_1 = arith.constant dense<0.000000e+00> : vector<16xf32>
    %6 = vector.multi_reduction <add>, %5, %cst_1 [1] : vector<16x32xf32> to vector<16xf32>
    %7 = vector.shape_cast %6 : vector<16xf32> to vector<16x1xf32>
    %8 = math.log %7 : vector<16x1xf32>
    %9 = arith.addf %8, %2 : vector<16x1xf32>
    %c0_2 = arith.constant 0 : index
    %c0_3 = arith.constant 0 : index
    %10 = vector.load %arg2[%c0_2, %c0_3] : memref<16x1xi32, #tpu.memory_space<vmem>>, vector<16x1xi32>
    %11 = tpu.iota {dimensions = array<i32: 1>} : vector<16x32xi32>
    %12 = vector.broadcast %10 : vector<16x1xi32> to vector<16x32xi32>
    %13 = arith.cmpi eq, %11, %12 : vector<16x32xi32>
    %cst_4 = arith.constant 0.000000e+00 : f32
    %14 = vector.broadcast %cst_4 : f32 to vector<16x32xf32>
    %15 = arith.select %13, %0, %14 : vector<16x32xi1>, vector<16x32xf32>
    %cst_5 = arith.constant dense<0.000000e+00> : vector<16xf32>
    %16 = vector.multi_reduction <add>, %15, %cst_5 [1] : vector<16x32xf32> to vector<16xf32>
    %17 = vector.shape_cast %16 : vector<16xf32> to vector<16x1xf32>
    %c-100_i32 = arith.constant -100 : i32
    %18 = vector.broadcast %c-100_i32 : i32 to vector<16x1xi32>
    %19 = arith.cmpi ne, %10, %18 : vector<16x1xi32>
    %20 = arith.subf %9, %17 : vector<16x1xf32>
    %cst_6 = arith.constant 0.000000e+00 : f32
    %21 = vector.broadcast %cst_6 : f32 to vector<16x1xf32>
    %22 = arith.select %19, %20, %21 : vector<16x1xi1>, vector<16x1xf32>
    %23 = vector.shape_cast %22 : vector<16x1xf32> to vector<1x16x1xf32>
    %cst_7 = arith.constant dense<0.000000e+00> : vector<1xf32>
    %24 = vector.multi_reduction <add>, %23, %cst_7 [1, 2] : vector<1x16x1xf32> to vector<1xf32>
    %25 = vector.shape_cast %24 : vector<1xf32> to vector<1x1x1xf32>
    %26 = vector.extract %25[0, 0, 0] : f32 from vector<1x1x1xf32>
    %27 = arith.extui %19 : vector<16x1xi1> to vector<16x1xi32>
    %28 = arith.sitofp %27 : vector<16x1xi32> to vector<16x1xf32>
    %29 = vector.shape_cast %28 : vector<16x1xf32> to vector<1x16x1xf32>
    %cst_8 = arith.constant dense<0.000000e+00> : vector<1xf32>
    %30 = vector.multi_reduction <add>, %29, %cst_8 [1, 2] : vector<1x16x1xf32> to vector<1xf32>
    %31 = vector.shape_cast %30 : vector<1xf32> to vector<1x1x1xf32>
    %32 = vector.extract %31[0, 0, 0] : f32 from vector<1x1x1xf32>
    %33 = tpu.iota {dimensions = array<i32: 0>} : vector<8x128xi32>
    %c0_i32 = arith.constant 0 : i32
    %34 = vector.broadcast %c0_i32 : i32 to vector<8x128xi32>
    %35 = arith.cmpi eq, %33, %34 : vector<8x128xi32>
    %c1_i32 = arith.constant 1 : i32
    %36 = vector.broadcast %c1_i32 : i32 to vector<8x128xi32>
    %37 = arith.cmpi eq, %33, %36 : vector<8x128xi32>
    %cst_9 = arith.constant 0.000000e+00 : f32
    %38 = vector.broadcast %32 : f32 to vector<8x128xf32>
    %39 = vector.broadcast %cst_9 : f32 to vector<8x128xf32>
    %40 = arith.select %37, %38, %39 : vector<8x128xi1>, vector<8x128xf32>
    %41 = vector.broadcast %26 : f32 to vector<8x128xf32>
    %42 = arith.select %35, %41, %40 : vector<8x128xi1>, vector<8x128xf32>
    %43 = vector.shape_cast %42 : vector<8x128xf32> to vector<1x8x128xf32>
    %c0_10 = arith.constant 0 : index
    %c0_11 = arith.constant 0 : index
    %c0_12 = arith.constant 0 : index
    %44 = vector.load %arg3[%c0_10, %c0_11, %c0_12] : memref<1x8x128xf32, #tpu.memory_space<vmem>>, vector<1x8x128xf32>
    tpu.vector_store %arg3[%c0_10, %c0_11, %c0_12], %43 {strides = array<i32>} : memref<1x8x128xf32, #tpu.memory_space<vmem>>, vector<1x8x128xf32>,
    return
  }
  func.func @transform_0(%arg0: i32) -> (i32, i32) {
    %c0_i32 = arith.constant 0 : i32
    %c0_i32_0 = arith.constant 0 : i32
    return %arg0, %c0_i32 : i32, i32
  }
  func.func @transform_1(%arg0: i32) -> (i32, i32) {
    %c0_i32 = arith.constant 0 : i32
    %c0_i32_0 = arith.constant 0 : i32
    return %arg0, %c0_i32 : i32, i32
  }
  func.func @transform_2(%arg0: i32) -> (i32, i32, i32) {
    %c0_i32 = arith.constant 0 : i32
    %c0_i32_0 = arith.constant 0 : i32
    %c0_i32_1 = arith.constant 0 : i32
    return %arg0, %c0_i32, %c0_i32_0 : i32, i32, i32
  }
}

</mosaic_0001>

<llo_original>
// kernel: tpu_custom_call.1
$region0: #{tpu_custom_call.1}
  #allocation0 [shape = 'u32[]', space=smem, size = 0x4, offset = 0x4, fixed_abs, tag = 'smem constant byte address 0x4 - core index']
  #allocation1 [shape = 'u32[144,128]{1,0:T(1,128)}', space=vmem, size = 0x12000, scoped, tag = 'internal scratch']
  %s0 = inlined_call_operand.vmem [shape: f32[16,32], index: 0, kind: input, shape index: {}]
  %s1 = inlined_call_operand.vmem [shape: s32[16,1], index: 1, kind: input, shape index: {}]
  %s2 = inlined_call_operand.hbm [shape: f32[1,8,128], index: 2, kind: output, shape index: {}]
  %s3 = sld [smem:[#allocation0]]
  $region18: #{tpu_custom_call.1} parent=0
    _
  %s5 = ssub.s32 1, %s3
  %s6 = scalar_select 0, %s5, %s3
  $region1: #{tpu_custom_call.1} parent=0
    #allocation2 [shape = 'u8[4096]{0}', space=vmem, size = 0x1000, scoped, tag = 'output window, operand 0, single buffered']
    #allocation3 [shape = 's32[1]{0}', space=sflag, size = 0x4, scoped, tag = 'scoped memory for tpu_custom_call.1']
    %7 = vsyncpa [#allocation3], 0
    // Predicated region
    $region2: #{tpu_custom_call.1} parent=1 // pred_check
      _
    $region3: #{tpu_custom_call.1} parent=1 // pred_check_branch
      %9 = sbr.rel (0) target = $region5
    $region4: #{tpu_custom_call.1} parent=1 // pred_region
      _
    $region5: #{tpu_custom_call.1} parent=1 // pred_fallthru
      _
    // Predicated region
    $region6: #{tpu_custom_call.1} parent=1 // pred_check
      _
    $region7: #{tpu_custom_call.1} parent=1 // pred_check_branch
      %11 = sbr.rel (0) target = $region9
    $region8: #{tpu_custom_call.1} parent=1 // pred_region
      _
    $region9: #{tpu_custom_call.1} parent=1 // pred_fallthru
      _
    %v12 = vld [vmem:[%s0] sm:$0xff]
    %v13 = vld [vmem:[%s0 + $0x8] sm:$0xff]
    %vm14 = vcmask 261120
    %v15 = vsel %vm14, %v12, -inf
    %16 = vmax.xlane.f32.xlu0 %v15
    %v17 = vpop.xlane.xlu0 %16
    %v18 = vsel %vm14, %v13, -inf
    %19 = vmax.xlane.f32.xlu0 %v18
    %v20 = vpop.xlane.xlu0 %19
    %v21 = vsub.f32 %v12, %v17
    %v22 = vsub.f32 %v13, %v20
    %v23 = vmul.f32 %v21, 1.442695
    %v24 = vpow.pop %v23
    %v25 = vmul.f32 %v22, 1.442695
    %v26 = vpow.pop %v25
    %v27 = vsel %vm14, %v24, 0.0
    %28 = vadd.xlane.f32.xlu0 %v27
    %v29 = vpop.xlane.xlu0 %28
    %v30 = vsel %vm14, %v26, 0.0
    %31 = vadd.xlane.f32.xlu0 %v30
    %v32 = vpop.xlane.xlu0 %31
    %v33 = vlog2.pop %v29
    %v34 = vmul.f32 %v33, 0.6931472
    %v35 = vlog2.pop %v32
    %v36 = vmul.f32 %v35, 0.6931472
    %v37 = vadd.f32 %v34, %v17
    %v38 = vadd.f32 %v36, %v20
    %v39 = vld [vmem:[%s1] sm:$0xff]
    %v40 = vld [vmem:[%s1 + $0x8] sm:$0xff]
    %v41 = vlaneseq
    %v42 = vand.u32 %v41, 127
    %43 = vset.pattern.permute.xlu0 0
    %44 = vperm.xlu0 %43, %v39
    %v45 = vpop.permute.xlu0 %44
    %46 = vset.pattern.permute.xlu0 0
    %47 = vperm.xlu0 %46, %v40
    %v48 = vpop.permute.xlu0 %47
    %vm49 = vcmp.eq.s32.totalorder %v42, %v45
    %vm50 = vcmp.eq.s32.totalorder %v42, %v48
    %v51 = vsel %vm49, %v12, 0.0
    %v52 = vsel %vm50, %v13, 0.0
    %v53 = vsel %vm14, %v51, 0.0
    %54 = vadd.xlane.f32.xlu0 %v53
    %v55 = vpop.xlane.xlu0 %54
    %v56 = vsel %vm14, %v52, 0.0
    %57 = vadd.xlane.f32.xlu0 %v56
    %v58 = vpop.xlane.xlu0 %57
    %vm59 = vcmp.ne.s32.totalorder %v39, 4294967196
    %vm60 = vcmp.ne.s32.totalorder %v40, 4294967196
    %v61 = vsub.f32 %v37, %v55
    %v62 = vsub.f32 %v38, %v58
    %v63 = vsel %vm59, %v61, 0.0
    %v64 = vsel %vm60, %v62, 0.0
    %vm65 = vcmask 7168
    %v66 = vsel %vm65, %v63, 0.0
    %v67 = vsel %vm65, %v64, 0.0
    %v68 = vadd.f32 %v66, %v67
    %69 = vadd.xlane.f32.xlu0 %v68
    %v70 = vpop.xlane.xlu0 %69
    %v71 = vrot.slane %v70, 4
    %v72 = vadd.f32 %v70, %v71
    %v73 = vrot.slane %v72, 2
    %v74 = vadd.f32 %v72, %v73
    %v75 = vrot.slane %v74, 1
    %v76 = vadd.f32 %v74, %v75
    %s77 = vtos %v76
    %v78 = vsel %vm59, 1, 0
    %v79 = vsel %vm60, 1, 0
    %v80 = vcvt.s32.f32 %v78
    %v81 = vcvt.s32.f32 %v79
    %v82 = vsel %vm65, %v80, 0.0
    %v83 = vsel %vm65, %v81, 0.0
    %v84 = vadd.f32 %v82, %v83
    %85 = vadd.xlane.f32.xlu0 %v84
    %v86 = vpop.xlane.xlu0 %85
    %v87 = vrot.slane %v86, 4
    %v88 = vadd.f32 %v86, %v87
    %v89 = vrot.slane %v88, 2
    %v90 = vadd.f32 %v88, %v89
    %v91 = vrot.slane %v90, 1
    %v92 = vadd.f32 %v90, %v91
    %s93 = vtos %v92
    %v94 = vlaneseq
    %v95 = vshrl.u32 %v94, 7
    %vm96 = vcmp.eq.s32.totalorder %v95, 0
    %vm97 = vcmp.eq.s32.totalorder %v95, 1
    %v98 = vstv %s93
    %v99 = vsel %vm97, %v98, 0.0
    %v100 = vstv %s77
    %v101 = vsel %vm96, %v100, %v99
    %102 = vst [vmem:[#allocation2] sm:$0xff] %v101
    // Predicated region
    $region10: #{tpu_custom_call.1} parent=1 // pred_check
      _
    $region11: #{tpu_custom_call.1} parent=1 // pred_check_branch
      %104 = sbr.rel (0) target = $region13
    $region12: #{tpu_custom_call.1} parent=1 // pred_region
      %s106 = ssub.s32 128, 128
      %107 = vsyncadd [#allocation3], %s106
      %s109 = sshll.u32 [#allocation2], 4
      %s110 = int_to_ptr.vmem [resolvable:$true] %s109
      %112 = dma.vmem_to_hbm [thread:$0]  %s110, 128, %s2, [#allocation3]
    $region13: #{tpu_custom_call.1} parent=1 // pred_fallthru
      _
    // Predicated region
    $region14: #{tpu_custom_call.1} parent=1 // pred_check
      _
    $region15: #{tpu_custom_call.1} parent=1 // pred_check_branch
      %114 = sbr.rel (0) target = $region17
    $region16: #{tpu_custom_call.1} parent=1 // pred_region
      %115 = dma.done [#allocation3], 128
    $region17: #{tpu_custom_call.1} parent=1 // pred_fallthru
      _
    %116 = vsyncpa [#allocation3], 1

</llo_original>
